<compile_context>
chip_gen: v5e
topology: v5e:2x2
jax: 0.10.0
libtpu: 0.0.40
codegen_flags: <defaults>
</compile_context>

<pallas_src>
import jax
import jax.numpy as jnp
from jax import lax
from jax.experimental import pallas as pl
from jax.experimental.pallas import tpu as pltpu


def _upsample_conv_kernel(x_ref, patch_ref, w_ref, b_ref, y_ref):
    # x_ref:     (C, TL)     input tile (lane-dense)
    # patch_ref: (nL, O, 2)  per-tile boundary contributions, resident per n:
    #                        [l, :, 0] = W0 @ x[:, l*TL - 1]   (0 at left edge)
    #                        [l, :, 1] = W2 @ x[:, (l+1)*TL]   (0 at right edge)
    # w_ref:     (4O, C)     fused weights [W0; W1+W2; W0+W1; W2]
    # b_ref:     (2O, 1)     bias stacked twice (f32)
    # y_ref:     (2O, TL)    rows [:O] = y[:, 2t] (even), rows [O:] = y[:, 2t+1]
    two_o, TL = y_ref.shape
    O = two_o // 2
    l = pl.program_id(1)

    # One MXU pass: (4O, C) @ (C, TL) with f32 accumulation.
    acc = jnp.dot(w_ref[...], x_ref[...], preferred_element_type=jnp.float32)

    patch = patch_ref[l].astype(jnp.float32)      # (O, 2)
    left_p = patch[:, 0:1]                        # W0 @ left-halo column
    right_p = patch[:, 1:2]                       # W2 @ right-halo column

    a0 = acc[0 * O:1 * O]      # W0      @ x[t]
    a1 = acc[1 * O:2 * O]      # (W1+W2) @ x[t]
    a2 = acc[2 * O:3 * O]      # (W0+W1) @ x[t]
    a3 = acc[3 * O:4 * O]      # W2      @ x[t]

    lane = lax.broadcasted_iota(jnp.int32, (O, TL), 1)
    # even outputs: W0 @ x[t-1] + (W1+W2) @ x[t];  lane 0 takes the left halo.
    ye = jnp.where(lane == 0, left_p, pltpu.roll(a0, 1, axis=1)) + a1
    # odd outputs: (W0+W1) @ x[t] + W2 @ x[t+1];  lane TL-1 takes the right halo.
    yo = a2 + jnp.where(lane == TL - 1, right_p, pltpu.roll(a3, TL - 1, axis=1))

    b = b_ref[...]                                # (2O, 1) f32
    y_ref[:O, :] = (ye + b[:O]).astype(y_ref.dtype)
    y_ref[O:, :] = (yo + b[O:]).astype(y_ref.dtype)


def _choose_tiling(L, target):
    """Return (TL, Lp): tile length and padded length with Lp % TL == 0.

    TL is a multiple of 128 (or TL == L when everything fits one tile) and is
    capped at `target`, so VMEM stays bounded independent of L (v7x: 64 MiB).
    """
    target = max(128, (target // 128) * 128)
    if L <= target:
        return L, L                    # single tile: block dims == full dims
    for t in range(target, 0, -128):   # largest 128-aligned divisor of L
        if L % t == 0:
            return t, L
    # No aligned divisor <= target: pad L up to a multiple of `target`.
    Lp = ((L + target - 1) // target) * target
    return target, Lp


def upsample_forward(x, weight, bias, *, tile_l=1024):
    """x: (N, C, L); weight: (O, C, 3); bias: (O,).
    Returns Conv1d(k=3, pad=1)(nearest_upsample_x2(x)) of shape (N, O, 2L)."""
    N, C, L = x.shape
    O = weight.shape[0]
    TL, Lp = _choose_tiling(L, tile_l)
    nL = Lp // TL

    if Lp != L:
        # Zero columns beyond L reproduce the conv's zero padding at position L;
        # outputs past 2L are sliced away below.
        x = jnp.pad(x, ((0, 0), (0, 0), (0, Lp - L)))

    # ---- fused weight / bias prep (tiny, one-time; sums in f32) ----
    wf = weight.astype(jnp.float32)
    w0, w1, w2 = wf[:, :, 0], wf[:, :, 1], wf[:, :, 2]
    w4 = jnp.concatenate([w0, w1 + w2, w0 + w1, w2], axis=0).astype(x.dtype)  # (4O, C)
    b2 = jnp.concatenate([bias, bias]).reshape(2 * O, 1).astype(jnp.float32)  # (2O, 1)

    # ---- per-tile boundary contributions (N, nL, O, 2), resident per batch ----
    zcol = jnp.zeros((N, C, 1), x.dtype)
    left_cols = jnp.concatenate(
        [zcol, x[:, :, TL - 1::TL][:, :, :nL - 1]], axis=2)        # (N, C, nL)
    right_cols = jnp.concatenate([x[:, :, TL::TL], zcol], axis=2)  # (N, C, nL)
    left_p = jnp.einsum("oc,ncl->nlo", w0, left_cols.astype(jnp.float32))
    right_p = jnp.einsum("oc,ncl->nlo", w2, right_cols.astype(jnp.float32))
    patch = jnp.stack([left_p, right_p], axis=-1).astype(x.dtype)  # (N, nL, O, 2)

    # ---- VMEM budget: double-buffered blocks + resident slabs, capped for v7x ----
    itemsize = jnp.dtype(x.dtype).itemsize
    blk_bytes = (C + 2 * O) * TL * itemsize                  # x tile + y tile
    patch_bytes = nL * max(O, 8) * 128 * itemsize            # lane-padded slab
    w_bytes = (4 * O * max(C, 128) + 2 * O * 128) * itemsize
    est = 2 * blk_bytes + 2 * patch_bytes + w_bytes
    vmem_limit = int(min(56 * 1024 * 1024, max(32 * 1024 * 1024, 2 * est)))

    y2 = pl.pallas_call(
        _upsample_conv_kernel,
        out_shape=jax.ShapeDtypeStruct((N, 2 * O, Lp), x.dtype),
        grid_spec=pltpu.PrefetchScalarGridSpec(
            num_scalar_prefetch=0,
            grid=(N, nL),
            in_specs=[
                pl.BlockSpec((pl.Squeezed(), C, TL), lambda n, l: (n, 0, l)),
                pl.BlockSpec((pl.Squeezed(), nL, O, 2), lambda n, l: (n, 0, 0, 0)),
                pl.BlockSpec((4 * O, C), lambda n, l: (0, 0)),
                pl.BlockSpec((2 * O, 1), lambda n, l: (0, 0)),
            ],
            out_specs=pl.BlockSpec((pl.Squeezed(), 2 * O, TL), lambda n, l: (n, 0, l)),
        ),
        compiler_params=pltpu.CompilerParams(
            dimension_semantics=("parallel", "parallel"),
            vmem_limit_bytes=vmem_limit),
    )(x, patch, w4, b2)

    # Final even/odd interleave (see TODO at top of file).
    ye = y2[:, :O, :L]
    yo = y2[:, O:, :L]
    return jnp.stack([ye, yo], axis=-1).reshape(N, O, 2 * L)


def _reference(x, weight, bias):
    # Pure-JAX reference mirroring the PyTorch forward exactly.
    xu = jnp.repeat(x, 2, axis=-1)                       # nearest, scale=2
    y = lax.conv_general_dilated(
        xu, weight, window_strides=(1,), padding=((1, 1),),
        dimension_numbers=("NCH", "OIH", "NCH"))
    return y + bias[None, :, None]


def _check(key, N, C, O, L):
    kx, kw, kb = jax.random.split(key, 3)
    x = jax.random.normal(kx, (N, C, L), dtype=jnp.float32)
    w = 0.1 * jax.random.normal(kw, (O, C, 3), dtype=jnp.float32)
    b = 0.1 * jax.random.normal(kb, (O,), dtype=jnp.float32)
    out = jax.block_until_ready(upsample_forward(x, w, b))
    ref = jax.block_until_ready(_reference(x, w, b))
    assert out.shape == (N, O, 2 * L), out.shape
    err = float(jnp.max(jnp.abs(out - ref)))
    assert jnp.allclose(out, ref, atol=1e-4, rtol=1e-4), err


if __name__ == "__main__":
    key = jax.random.PRNGKey(0)
    k1, k2, k3 = jax.random.split(key, 3)

    # Small config matching the module's intended tiny sizes.
    _check(k1, N=2, C=4, O=8, L=16)
    # Multi-tile path with padding (L=2000 -> TL=1024, Lp=2048, nL=2).
    _check(k2, N=2, C=8, O=16, L=2000)
    # Multi-tile path with an exact 128-aligned divisor (L=1536 -> TL=768, nL=2).
    _check(k3, N=2, C=8, O=16, L=1536)

    print("KERNEL_OK")
</pallas_src>

<mosaic_0001>
module attributes {stable_mosaic.version = 11 : i64} {
  func.func @_upsample_conv_kernel(%arg0: i32, %arg1: i32, %arg2: memref<1x4x16xf32, #tpu.memory_space<vmem>>, %arg3: memref<1x1x8x2xf32, #tpu.memory_space<vmem>>, %arg4: memref<32x4xf32, #tpu.memory_space<vmem>>, %arg5: memref<16x1xf32, #tpu.memory_space<vmem>>, %arg6: memref<1x16x16xf32, #tpu.memory_space<vmem>>) attributes {dimension_semantics = [#tpu.dimension_semantics<parallel>, #tpu.dimension_semantics<parallel>], iteration_bounds = array<i64: 2, 1>, scalar_prefetch = 0 : i64, scratch_operands = 0 : i64, tpu.core_type = #tpu.core_type<tc>, window_params = [{transform_indices = @transform_0, window_bounds = array<i64: 1, 4, 16>}, {transform_indices = @transform_1, window_bounds = array<i64: 1, 1, 8, 2>}, {pipeline_mode = #tpu.pipeline_mode<synchronous>, transform_indices = @transform_2, window_bounds = array<i64: 32, 4>}, {pipeline_mode = #tpu.pipeline_mode<synchronous>, transform_indices = @transform_3, window_bounds = array<i64: 16, 1>}, {transform_indices = @transform_4, window_bounds = array<i64: 1, 16, 16>}]} {
    %c0 = arith.constant 0 : index
    %c0_0 = arith.constant 0 : index
    %0 = vector.load %arg4[%c0, %c0_0] : memref<32x4xf32, #tpu.memory_space<vmem>>, vector<32x4xf32>
    %c0_1 = arith.constant 0 : index
    %c0_2 = arith.constant 0 : index
    %c0_3 = arith.constant 0 : index
    %1 = vector.load %arg2[%c0_1, %c0_2, %c0_3] : memref<1x4x16xf32, #tpu.memory_space<vmem>>, vector<1x4x16xf32>
    %2 = vector.shape_cast %1 : vector<1x4x16xf32> to vector<4x16xf32>
    %cst = arith.constant dense<0.000000e+00> : vector<32x16xf32>
    %3 = tpu.matmul %0, %2, %cst {dimension_numbers = #tpu.dot_dimension_numbers<[1], [0], [0], [1], [0, 0, 1, 1], [], []>} : vector<32x4xf32>, vector<4x16xf32>, vector<32x16xf32> -> vector<32x16xf32>
    %c0_4 = arith.constant 0 : index
    %4 = arith.index_cast %arg1 : i32 to index
    %c0_5 = arith.constant 0 : index
    %c0_6 = arith.constant 0 : index
    %5 = vector.load %arg3[%c0_4, %4, %c0_5, %c0_6] : memref<1x1x8x2xf32, #tpu.memory_space<vmem>>, vector<1x1x8x2xf32>
    %6 = vector.shape_cast %5 : vector<1x1x8x2xf32> to vector<8x2xf32>
    %7 = vector.extract_strided_slice %6 {offsets = [0, 0], sizes = [8, 1], strides = [1, 1]} : vector<8x2xf32> to vector<8x1xf32>
    %8 = vector.extract_strided_slice %6 {offsets = [0, 1], sizes = [8, 1], strides = [1, 1]} : vector<8x2xf32> to vector<8x1xf32>
    %9 = vector.extract_strided_slice %3 {offsets = [0, 0], sizes = [8, 16], strides = [1, 1]} : vector<32x16xf32> to vector<8x16xf32>
    %10 = vector.extract_strided_slice %3 {offsets = [8, 0], sizes = [8, 16], strides = [1, 1]} : vector<32x16xf32> to vector<8x16xf32>
    %11 = vector.extract_strided_slice %3 {offsets = [16, 0], sizes = [8, 16], strides = [1, 1]} : vector<32x16xf32> to vector<8x16xf32>
    %12 = vector.extract_strided_slice %3 {offsets = [24, 0], sizes = [8, 16], strides = [1, 1]} : vector<32x16xf32> to vector<8x16xf32>
    %13 = tpu.iota {dimensions = array<i32: 1>} : vector<8x16xi32>
    %c0_i32 = arith.constant 0 : i32
    %14 = vector.broadcast %c0_i32 : i32 to vector<8x16xi32>
    %15 = arith.cmpi eq, %13, %14 : vector<8x16xi32>
    %c1_i32 = arith.constant 1 : i32
    %16 = tpu.dynamic_rotate %9 by %c1_i32 dim 1 : vector<8x16xf32>, i32 -> vector<8x16xf32>
    %17 = vector.shape_cast %7 : vector<8x1xf32> to vector<8x1xf32>
    %18 = vector.broadcast %17 : vector<8x1xf32> to vector<8x16xf32>
    %19 = arith.select %15, %18, %16 : vector<8x16xi1>, vector<8x16xf32>
    %20 = arith.addf %19, %10 : vector<8x16xf32>
    %c15_i32 = arith.constant 15 : i32
    %21 = vector.broadcast %c15_i32 : i32 to vector<8x16xi32>
    %22 = arith.cmpi eq, %13, %21 : vector<8x16xi32>
    %c15_i32_7 = arith.constant 15 : i32
    %23 = tpu.dynamic_rotate %12 by %c15_i32_7 dim 1 : vector<8x16xf32>, i32 -> vector<8x16xf32>
    %24 = vector.shape_cast %8 : vector<8x1xf32> to vector<8x1xf32>
    %25 = vector.broadcast %24 : vector<8x1xf32> to vector<8x16xf32>
    %26 = arith.select %22, %25, %23 : vector<8x16xi1>, vector<8x16xf32>
    %27 = arith.addf %11, %26 : vector<8x16xf32>
    %c0_8 = arith.constant 0 : index
    %c0_9 = arith.constant 0 : index
    %28 = vector.load %arg5[%c0_8, %c0_9] : memref<16x1xf32, #tpu.memory_space<vmem>>, vector<16x1xf32>
    %29 = vector.extract_strided_slice %28 {offsets = [0, 0], sizes = [8, 1], strides = [1, 1]} : vector<16x1xf32> to vector<8x1xf32>
    %30 = vector.broadcast %29 : vector<8x1xf32> to vector<8x16xf32>
    %31 = arith.addf %20, %30 : vector<8x16xf32>
    %c0_10 = arith.constant 0 : index
    %c0_11 = arith.constant 0 : index
    %c0_12 = arith.constant 0 : index
    %32 = vector.load %arg6[%c0_10, %c0_11, %c0_12] : memref<1x16x16xf32, #tpu.memory_space<vmem>>, vector<1x8x16xf32>
    %33 = vector.shape_cast %32 : vector<1x8x16xf32> to vector<8x16xf32>
    %34 = vector.shape_cast %31 : vector<8x16xf32> to vector<1x8x16xf32>
    tpu.vector_store %arg6[%c0_10, %c0_11, %c0_12], %34 {strides = array<i32>} : memref<1x16x16xf32, #tpu.memory_space<vmem>>, vector<1x8x16xf32>,
    %35 = vector.extract_strided_slice %28 {offsets = [8, 0], sizes = [8, 1], strides = [1, 1]} : vector<16x1xf32> to vector<8x1xf32>
    %36 = vector.broadcast %35 : vector<8x1xf32> to vector<8x16xf32>
    %37 = arith.addf %27, %36 : vector<8x16xf32>
    %c0_13 = arith.constant 0 : index
    %c8 = arith.constant 8 : index
    %c0_14 = arith.constant 0 : index
    %38 = vector.load %arg6[%c0_13, %c8, %c0_14] : memref<1x16x16xf32, #tpu.memory_space<vmem>>, vector<1x8x16xf32>
    %39 = vector.shape_cast %38 : vector<1x8x16xf32> to vector<8x16xf32>
    %40 = vector.shape_cast %37 : vector<8x16xf32> to vector<1x8x16xf32>
    tpu.vector_store %arg6[%c0_13, %c8, %c0_14], %40 {strides = array<i32>} : memref<1x16x16xf32, #tpu.memory_space<vmem>>, vector<1x8x16xf32>,
    return
  }
  func.func @transform_0(%arg0: i32, %arg1: i32) -> (i32, i32, i32) {
    %c0_i32 = arith.constant 0 : i32
    %c0_i32_0 = arith.constant 0 : i32
    return %arg0, %c0_i32, %arg1 : i32, i32, i32
  }
  func.func @transform_1(%arg0: i32, %arg1: i32) -> (i32, i32, i32, i32) {
    %c0_i32 = arith.constant 0 : i32
    %c0_i32_0 = arith.constant 0 : i32
    %c0_i32_1 = arith.constant 0 : i32
    %c0_i32_2 = arith.constant 0 : i32
    return %arg0, %c0_i32, %c0_i32_0, %c0_i32_1 : i32, i32, i32, i32
  }
  func.func @transform_2(%arg0: i32, %arg1: i32) -> (i32, i32) {
    %c0_i32 = arith.constant 0 : i32
    %c0_i32_0 = arith.constant 0 : i32
    %c0_i32_1 = arith.constant 0 : i32
    return %c0_i32, %c0_i32_0 : i32, i32
  }
  func.func @transform_3(%arg0: i32, %arg1: i32) -> (i32, i32) {
    %c0_i32 = arith.constant 0 : i32
    %c0_i32_0 = arith.constant 0 : i32
    %c0_i32_1 = arith.constant 0 : i32
    return %c0_i32, %c0_i32_0 : i32, i32
  }
  func.func @transform_4(%arg0: i32, %arg1: i32) -> (i32, i32, i32) {
    %c0_i32 = arith.constant 0 : i32
    %c0_i32_0 = arith.constant 0 : i32
    return %arg0, %c0_i32, %arg1 : i32, i32, i32
  }
}

</mosaic_0001>

<llo_original>
// kernel: tpu_custom_call.1
$region0: #{tpu_custom_call.1}
  #allocation0 [shape = 'u32[]', space=smem, size = 0x4, offset = 0x4, fixed_abs, tag = 'smem constant byte address 0x4 - core index']
  #allocation1 [shape = 'u32[72,128]{1,0:T(1,128)}', space=vmem, size = 0x9000, scoped, tag = 'internal scratch']
  %s0 = inlined_call_operand.vmem [shape: f32[2,4,16], index: 0, kind: input, shape index: {}]
  %s1 = inlined_call_operand.vmem [shape: f32[2,1,8,2], index: 1, kind: input, shape index: {}]
  %s2 = inlined_call_operand.vmem [shape: f32[32,4], index: 2, kind: input, shape index: {}]
  %s3 = inlined_call_operand.vmem [shape: f32[16,1], index: 3, kind: input, shape index: {}]
  %s4 = inlined_call_operand.hbm [shape: f32[2,16,16], index: 4, kind: output, shape index: {}]
  %s5 = sld [smem:[#allocation0]]
  $region49: #{tpu_custom_call.1} parent=0
    _
  %s7 = ssub.s32 1, %s5
  %s8 = scalar_select 0, %s7, %s5
  $region1: #{tpu_custom_call.1} parent=0
    #allocation2 [shape = 'u8[16384]{0}', space=vmem, size = 0x4000, scoped, tag = 'output window, operand 0']
    #allocation3 [shape = 's32[2]{0}', space=sflag, size = 0x8, scoped, tag = 'scoped memory for tpu_custom_call.1']
    %9 = vsyncpa [#allocation3], 0
    %s10 = scalar_lea.sflag [#allocation3], 1
    %11 = vsyncpa %s10, 0
    loop: start=0, step=1, limit=4
    $region2: #{tpu_custom_call.1} parent=1 // loop_pre_header
      _
    $region3: #{tpu_custom_call.1} parent=1 // loop_header
      %s13 = sphi 0, %s17
      %p14 = scmp.ge.s32.totalorder %s13, 4
      %s20 = sphi 0, %s32
      %s21 = sphi 0, %s28
      %s22 = sphi 0, %s20
      %s23 = sphi 0, %s21
      %s24 = sphi 0, %s22
      %s25 = sphi 0, %s23
      %s37 = sphi 0, %s39
      %s40 = sphi 0, %s37
      %s41 = sphi 0, %s40
      %s57 = sphi 0, %s41
      %s63 = sphi 0, %s65
      %s66 = sphi 0, %s63
      %s67 = sphi 0, %s66
      %s83 = sphi 0, %s67
      %s87 = sphi 0, %s87
      %s89 = sphi 0, %s87
      %s90 = sphi 0, %s89
      %s104 = sphi 0, %s90
      %s108 = sphi 0, %s108
      %s110 = sphi 0, %s108
      %s111 = sphi 0, %s110
      %s125 = sphi 0, %s111
      %s133 = sphi 0, %s135
      %s136 = sphi 0, %s133
      %s137 = sphi 0, %s136
      %s153 = sphi 0, %s137
    $region4: #{tpu_custom_call.1} parent=1 // loop_header_branch
      %16 = sbr.rel (%p14) target = $region8
    $region5: #{tpu_custom_call.1} parent=1 // loop_body
      %s18 = ssub.s32 %s13, 1
      %s19 = ssub.s32 %s13, 2
      %s26 = sadd.s32 1, %s21
      %p27 = scmp.ge.s32.totalorder %s26, 1
      %s28 = scalar_select %p27, 0, %s26
      %s29 = sadd.s32 1, %s20
      %s30 = scalar_select %p27, %s29, %s20
      %p31 = scmp.ge.s32.totalorder %s30, 2
      %s32 = scalar_select %p31, 0, %s30
      %s33 = ssub.s32 %s20, %s32
      %s34 = ssub.s32 %s21, %s28
      %s35 = sor.u32 %s33, %s34
      %p36 = scmp.eq.s32.totalorder %s35, 0
      %s38 = sadd.s32 %s37, 1
      %s39 = scalar_select %p36, %s37, %s38
      %p42 = pneg %p36
      %p43 = scmp.eq.s32.totalorder %s13, 1
      %p44 = por %p42, %p43
      %p45 = scmp.ne.s32.totalorder %s37, %s40
      %p46 = scmp.eq.s32.totalorder %s13, 0
      %p47 = por %p45, %p46
      %p48 = scmp.ne.s32.totalorder %s37, %s40
      %p49 = scmp.eq.s32.totalorder %s18, 1
      %p50 = por %p48, %p49
      %p51 = scmp.ne.s32.totalorder %s40, %s41
      %p52 = scmp.eq.s32.totalorder %s18, 0
      %p53 = por %p51, %p52
      %p54 = scmp.ne.s32.totalorder %s40, %s41
      %p55 = scmp.eq.s32.totalorder %s19, 1
      %p56 = por %p54, %p55
      %p58 = scmp.ne.s32.totalorder %s41, %s57
      %p59 = scmp.eq.s32.totalorder %s19, 0
      %p60 = por %p58, %p59
      %s61 = ssub.s32 %s20, %s32
      %p62 = scmp.eq.s32.totalorder %s61, 0
      %s64 = sadd.s32 %s63, 1
      %s65 = scalar_select %p62, %s63, %s64
      %p68 = pneg %p62
      %p69 = scmp.eq.s32.totalorder %s13, 1
      %p70 = por %p68, %p69
      %p71 = scmp.ne.s32.totalorder %s63, %s66
      %p72 = scmp.eq.s32.totalorder %s13, 0
      %p73 = por %p71, %p72
      %p74 = scmp.ne.s32.totalorder %s63, %s66
      %p75 = scmp.eq.s32.totalorder %s18, 1
      %p76 = por %p74, %p75
      %p77 = scmp.ne.s32.totalorder %s66, %s67
      %p78 = scmp.eq.s32.totalorder %s18, 0
      %p79 = por %p77, %p78
      %p80 = scmp.ne.s32.totalorder %s66, %s67
      %p81 = scmp.eq.s32.totalorder %s19, 1
      %p82 = por %p80, %p81
      %p84 = scmp.ne.s32.totalorder %s67, %s83
      %p85 = scmp.eq.s32.totalorder %s19, 0
      %p86 = por %p84, %p85
      %s88 = sadd.s32 %s87, 1
      %p91 = scmp.eq.s32.totalorder %s13, 1
      %p92 = scmp.ne.s32.totalorder %s87, %s89
      %p93 = scmp.eq.s32.totalorder %s13, 0
      %p94 = por %p92, %p93
      %p95 = scmp.ne.s32.totalorder %s87, %s89
      %p96 = scmp.eq.s32.totalorder %s18, 1
      %p97 = por %p95, %p96
      %p98 = scmp.ne.s32.totalorder %s89, %s90
      %p99 = scmp.eq.s32.totalorder %s18, 0
      %p100 = por %p98, %p99
      %p101 = scmp.ne.s32.totalorder %s89, %s90
      %p102 = scmp.eq.s32.totalorder %s19, 1
      %p103 = por %p101, %p102
      %p105 = scmp.ne.s32.totalorder %s90, %s104
      %p106 = scmp.eq.s32.totalorder %s19, 0
      %p107 = por %p105, %p106
      %s109 = sadd.s32 %s108, 1
      %p112 = scmp.eq.s32.totalorder %s13, 1
      %p113 = scmp.ne.s32.totalorder %s108, %s110
      %p114 = scmp.eq.s32.totalorder %s13, 0
      %p115 = por %p113, %p114
      %p116 = scmp.ne.s32.totalorder %s108, %s110
      %p117 = scmp.eq.s32.totalorder %s18, 1
      %p118 = por %p116, %p117
      %p119 = scmp.ne.s32.totalorder %s110, %s111
      %p120 = scmp.eq.s32.totalorder %s18, 0
      %p121 = por %p119, %p120
      %p122 = scmp.ne.s32.totalorder %s110, %s111
      %p123 = scmp.eq.s32.totalorder %s19, 1
      %p124 = por %p122, %p123
      %p126 = scmp.ne.s32.totalorder %s111, %s125
      %p127 = scmp.eq.s32.totalorder %s19, 0
      %p128 = por %p126, %p127
      %s129 = ssub.s32 %s20, %s32
      %s130 = ssub.s32 %s21, %s28
      %s131 = sor.u32 %s129, %s130
      %p132 = scmp.eq.s32.totalorder %s131, 0
      %s134 = sadd.s32 %s133, 1
      %s135 = scalar_select %p132, %s133, %s134
      %p138 = pneg %p132
      %p139 = scmp.eq.s32.totalorder %s13, 1
      %p140 = por %p138, %p139
      %p141 = scmp.ne.s32.totalorder %s133, %s136
      %p142 = scmp.eq.s32.totalorder %s13, 0
      %p143 = por %p141, %p142
      %p144 = scmp.ne.s32.totalorder %s133, %s136
      %p145 = scmp.eq.s32.totalorder %s18, 1
      %p146 = por %p144, %p145
      %p147 = scmp.ne.s32.totalorder %s136, %s137
      %p148 = scmp.eq.s32.totalorder %s18, 0
      %p149 = por %p147, %p148
      %p150 = scmp.ne.s32.totalorder %s136, %s137
      %p151 = scmp.eq.s32.totalorder %s19, 1
      %p152 = por %p150, %p151
      %p154 = scmp.ne.s32.totalorder %s137, %s153
      %p155 = scmp.eq.s32.totalorder %s19, 0
      %p156 = por %p154, %p155
      %p157 = scmp.le.s32.totalorder 1, %s13
      %p158 = scmp.lt.s32.totalorder %s13, 3
      %p159 = pnand %p157, %p158
      %p160 = pneg %p159
      // Predicated region
      $region9: #{tpu_custom_call.1} parent=5 // pred_check
        _
      $region10: #{tpu_custom_call.1} parent=5 // pred_check_branch
        %162 = sbr.rel (%p159) target = $region12
      $region11: #{tpu_custom_call.1} parent=5 // pred_region
        %s163 = ssub.s32 %s13, 1
        // Predicated region
        $region13: #{tpu_custom_call.1} parent=11 // pred_check
          %p164 = pneg %p100
        $region14: #{tpu_custom_call.1} parent=11 // pred_check_branch
          %166 = sbr.rel (%p164) target = $region16
        $region15: #{tpu_custom_call.1} parent=11 // pred_region
          _
        $region16: #{tpu_custom_call.1} parent=11 // pred_fallthru
          _
        // Predicated region
        $region17: #{tpu_custom_call.1} parent=11 // pred_check
          %p167 = pneg %p121
        $region18: #{tpu_custom_call.1} parent=11 // pred_check_branch
          %169 = sbr.rel (%p167) target = $region20
        $region19: #{tpu_custom_call.1} parent=11 // pred_region
          _
        $region20: #{tpu_custom_call.1} parent=11 // pred_fallthru
          _
      $region12: #{tpu_custom_call.1} parent=5 // pred_fallthru
        _
      %p170 = scmp.lt.s32.totalorder %s13, 2
      // Predicated region
      $region21: #{tpu_custom_call.1} parent=5 // pred_check
        %p171 = pneg %p170
      $region22: #{tpu_custom_call.1} parent=5 // pred_check_branch
        %173 = sbr.rel (%p171) target = $region24
      $region23: #{tpu_custom_call.1} parent=5 // pred_region
        // Predicated region
        $region25: #{tpu_custom_call.1} parent=23 // pred_check
          %p174 = pneg %p47
        $region26: #{tpu_custom_call.1} parent=23 // pred_check_branch
          %176 = sbr.rel (%p174) target = $region28
        $region27: #{tpu_custom_call.1} parent=23 // pred_region
          %p177 = scmp.lt.s32.totalorder %s20, 1
          %s178 = scalar_select %p177, %s20, 1
          %p179 = scmp.lt.s32.totalorder %s21, 0
          %s180 = scalar_select %p179, %s21, 0
          %s181 = sadd.s32 %s180, %s178
          %s182 = smul.addr %s181, 4
          %s183 = scalar_lea.vmem %s0, %s182
        $region28: #{tpu_custom_call.1} parent=23 // pred_fallthru
          _
        // Predicated region
        $region29: #{tpu_custom_call.1} parent=23 // pred_check
          %p184 = pneg %p73
        $region30: #{tpu_custom_call.1} parent=23 // pred_check_branch
          %186 = sbr.rel (%p184) target = $region32
        $region31: #{tpu_custom_call.1} parent=23 // pred_region
          %p187 = scmp.lt.s32.totalorder %s20, 1
          %s188 = scalar_select %p187, %s20, 1
          %s189 = smul.addr %s188, 8
          %s190 = scalar_lea.vmem %s1, %s189
        $region32: #{tpu_custom_call.1} parent=23 // pred_fallthru
          _
      $region24: #{tpu_custom_call.1} parent=5 // pred_fallthru
        _
      %p191 = scmp.le.s32.totalorder 1, %s13
      %p192 = scmp.lt.s32.totalorder %s13, 3
      %p193 = pnand %p191, %p192
      %p194 = pneg %p193
      // Predicated region
      $region33: #{tpu_custom_call.1} parent=5 // pred_check
        _
      $region34: #{tpu_custom_call.1} parent=5 // pred_check_branch
        %196 = sbr.rel (%p193) target = $region36
      $region35: #{tpu_custom_call.1} parent=5 // pred_region
        %s197 = ssub.s32 %s13, 1
        %p198 = scmp.lt.s32.totalorder %s22, 1
        %s199 = scalar_select %p198, %s22, 1
        %p200 = scmp.lt.s32.totalorder %s23, 0
        %s201 = scalar_select %p200, %s23, 0
        %s202 = sadd.s32 %s201, %s199
        %s203 = smul.addr %s202, 4
        %s204 = scalar_lea.vmem %s0, %s203
        %p205 = pneg %p53
        %p206 = pneg %p50
        %p207 = scmp.lt.s32.totalorder %s22, 1
        %s208 = scalar_select %p207, %s22, 1
        %s209 = smul.addr %s208, 8
        %s210 = scalar_lea.vmem %s1, %s209
        %p211 = pneg %p79
        %p212 = pneg %p76
        %p213 = pneg %p100
        %p214 = pneg %p97
        %p215 = pneg %p121
        %p216 = pneg %p118
        %p217 = pneg %p149
        %p218 = pneg %p146
        %s219 = sand.u32 %s136, 1
        %s220 = scalar_lea.sflag [#allocation3], %s219
        %s221 = sand.u32 %s136, 1
        %s222 = smul.addr %s221, 16
        %s223 = scalar_lea.vmem [#allocation2], %s222
        %p224 = scmp.lt.s32.totalorder %s22, 1
        %s225 = scalar_select %p224, %s22, 1
        %p226 = scmp.lt.s32.totalorder %s23, 0
        %s227 = scalar_select %p226, %s23, 0
        %s228 = sadd.s32 %s227, %s225
        %s229 = smul.addr %s228, 4
        %s230 = scalar_lea.vmem %s0, %s229
        %p231 = scmp.lt.s32.totalorder %s22, 1
        %s232 = scalar_select %p231, %s22, 1
        %s233 = smul.addr %s232, 8
        %s234 = scalar_lea.vmem %s1, %s233
        %v235 = vld [vmem:[%s2] sm:$0xff]
        %v236 = vld [vmem:[%s2 + $0x8] sm:$0xff]
        %v237 = vld [vmem:[%s2 + $0x10] sm:$0xff]
        %v238 = vld [vmem:[%s2 + $0x18] sm:$0xff]
        %v239 = vld [vmem:[%s230] sm:$0xf]
        %vm240 = vcmask 31744
        %v242 = vsel %vm240, %v235, 0
        %v245 = vsel %vm240, %v236, 0
        %v248 = vsel %vm240, %v237, 0
        %v251 = vsel %vm240, %v238, 0
        %vm253 = vcmask 1043456
        %v255 = vsel %vm253, %v239, 0
        %257 = vmatpush.msra.mxu0 0.0
        %258 = vmatpush.msra.mxu0 0.0
        %259 = vmatpush.msra.mxu0 0.0
        %260 = vmatpush.msra.mxu0 0.0
        %261 = vmatpush.msra.mxu0 0.0
        %262 = vmatpush.msra.mxu0 0.0
        %263 = vmatpush.msra.mxu0 0.0
        %264 = vmatpush.msra.mxu0 0.0
        %265 = vmatpush.msra.mxu0 0.0
        %266 = vmatpush.msra.mxu0 0.0
        %267 = vmatpush.msra.mxu0 0.0
        %268 = vmatpush.msra.mxu0 0.0
        %269 = vmatpush.msra.mxu0 0.0
        %270 = vmatpush.msra.mxu0 0.0
        %271 = vmatpush.msra.mxu0 0.0
        %272 = vmatpush.msra.mxu0 %v255
        %273 = vmatmul.f32.gmra.mxu0 %v242
        %v274 = vpop.f32.mrf.mxu0
        %v275 = vadd.f32 0.0, %v274
        %276 = vmatmul.f32.gmra.mxu0 %v245
        %v277 = vpop.f32.mrf.mxu0
        %v278 = vadd.f32 0.0, %v277
        %279 = vmatmul.f32.gmra.mxu0 %v248
        %v280 = vpop.f32.mrf.mxu0
        %v281 = vadd.f32 0.0, %v280
        %282 = vmatmul.f32.gmra.mxu0 %v251
        %v283 = vpop.f32.mrf.mxu0
        %v284 = vadd.f32 0.0, %v283
        %285 = vdwg.mxu0
        %s286 = smul.u32 %s23, 8
        %s287 = scalar_lea.vmem %s234, %s286
        %v288 = vld [vmem:[%s287] sm:$0xff]
        %v289 = vlaneseq
        %v290 = vand.u32 %v289, 127
        %vm291 = vcmp.eq.s32.totalorder %v290, 0
        %vm292 = vcmask 1047680
        %293 = vrot.lane.b32.xlu0 %v275, 16
        %v294 = vpop.permute.xlu0 %293
        %v295 = vsel %vm292, %v294, %v275
        %296 = vrot.lane.b32.xlu0 %v295, 16
        %v297 = vpop.permute.xlu0 %296
        %v298 = vsel %vm292, %v297, %v275
        %300 = vset.pattern.permute.xlu0 0
        %301 = vperm.xlu0 %300, %v288
        %v302 = vpop.permute.xlu0 %301
        %305 = vrot.lane.b32.xlu0 %v298, 113
        %v306 = vpop.permute.xlu0 %305
        %v308 = vsel %vm291, %v302, %v306
        %v309 = vadd.f32 %v308, %v278
        %vm310 = vcmp.eq.s32.totalorder %v290, 15
        %311 = vrot.lane.b32.xlu0 %v284, 16
        %v312 = vpop.permute.xlu0 %311
        %v313 = vsel %vm292, %v312, %v284
        %314 = vrot.lane.b32.xlu0 %v313, 16
        %v315 = vpop.permute.xlu0 %314
        %v316 = vsel %vm292, %v315, %v284
        %317 = vset.pattern.permute.xlu0 1
        %318 = vperm.xlu0 %317, %v288
        %v319 = vpop.permute.xlu0 %318
        %322 = vrot.lane.b32.xlu0 %v316, 127
        %v323 = vpop.permute.xlu0 %322
        %v325 = vsel %vm310, %v319, %v323
        %v326 = vadd.f32 %v281, %v325
        %v327 = vld [vmem:[%s3] sm:$0xff]
        %v328 = vld [vmem:[%s3 + $0x8] sm:$0xff]
        %330 = vset.pattern.permute.xlu0 0
        %331 = vperm.xlu0 %330, %v327
        %v332 = vpop.permute.xlu0 %331
        %v334 = vadd.f32 %v309, %v332
        %vm335 = vcmask 130048
        %336 = vst.msk [vmem:[%s223] sm:$0xff] %vm335, %v334
        %338 = vset.pattern.permute.xlu0 0
        %339 = vperm.xlu0 %338, %v328
        %v340 = vpop.permute.xlu0 %339
        %v342 = vadd.f32 %v326, %v340
        %343 = vst.msk [vmem:[%s223 + $0x8] sm:$0xff] %vm335, %v342
        %s344 = sand.u32 %s136, 1
        %s345 = scalar_lea.sflag [#allocation3], %s344
        %s346 = sand.u32 %s136, 1
        %s347 = smul.addr %s346, 16
        %s348 = scalar_lea.vmem [#allocation2], %s347
        // Predicated region
        $region37: #{tpu_custom_call.1} parent=35 // pred_check
          %p349 = pneg %p146
        $region38: #{tpu_custom_call.1} parent=35 // pred_check_branch
          %351 = sbr.rel (%p349) target = $region40
        $region39: #{tpu_custom_call.1} parent=35 // pred_region
          %353 = vsyncadd %s345, 0
          %s354 = smul.addr %s22, 2
          %s355 = sadd.s32 %s23, %s354
          %s356 = smul.addr %s355, 8
          %s357 = scalar_lea.hbm %s4, %s356
          %s358 = sshll.u32 %s348, 4
          %s359 = int_to_ptr.vmem [resolvable:$true] %s358
          %s360 = sshll.u32 %s357, 4
          %s361 = int_to_ptr.hbm [resolvable:$true] %s360
          %366 = dma.vmem_to_hbm [thread:$0]  %s359, 256, %s361, %s345, 128, 128, 8
        $region40: #{tpu_custom_call.1} parent=35 // pred_fallthru
          _
      $region36: #{tpu_custom_call.1} parent=5 // pred_fallthru
        _
      %p367 = scmp.le.s32.totalorder 2, %s13
      // Predicated region
      $region41: #{tpu_custom_call.1} parent=5 // pred_check
        %p368 = pneg %p367
      $region42: #{tpu_custom_call.1} parent=5 // pred_check_branch
        %370 = sbr.rel (%p368) target = $region44
      $region43: #{tpu_custom_call.1} parent=5 // pred_region
        %s371 = ssub.s32 %s13, 2
        // Predicated region
        $region45: #{tpu_custom_call.1} parent=43 // pred_check
          %p372 = pneg %p152
        $region46: #{tpu_custom_call.1} parent=43 // pred_check_branch
          %374 = sbr.rel (%p372) target = $region48
        $region47: #{tpu_custom_call.1} parent=43 // pred_region
          %s375 = sand.u32 %s137, 1
          %s376 = scalar_lea.sflag [#allocation3], %s375
          %s377 = sand.u32 %s137, 1
          %s378 = smul.addr %s377, 16
          %s379 = scalar_lea.vmem [#allocation2], %s378
          %381 = dma.done %s376, 256
        $region48: #{tpu_custom_call.1} parent=43 // pred_fallthru
          _
      $region44: #{tpu_custom_call.1} parent=5 // pred_fallthru
        _
    $region6: #{tpu_custom_call.1} parent=1 // loop_footer
      %s17 = sadd.s32 1, %s13
    $region7: #{tpu_custom_call.1} parent=1 // loop_footer_branch
      %12 = sbr.rel target = $region3
    $region8: #{tpu_custom_call.1} parent=1 // loop_exit
      _
    %382 = vsyncpa [#allocation3], 1
    %s383 = scalar_lea.sflag [#allocation3], 1
    %384 = vsyncpa %s383, 1

</llo_original>
